<compile_context>
chip_gen: v7x
topology: tpu7x:2x2x1
jax: 0.10.0
libtpu: 0.0.40
codegen_flags: <defaults>
</compile_context>

<pallas_src>
import functools

import jax
import jax.numpy as jnp
from jax.experimental import pallas as pl
from jax.experimental.pallas import tpu as pltpu

N_FFT = 32
HOP = 8
D = N_FFT // 2 + 1          # 17 frequency bins
D_PAD = 24                  # D rounded up to the 8-sublane granule
N_SHIFTS = N_FFT // HOP     # 4 shifted views rebuild one frame


def _round_up(a, m):
    return ((a + m - 1) // m) * m


def _mae_stft_kernel(yT_ref, basis_ref, x_ref, out_ref, *, true_t, need_mask):
    # yT_ref:    (HOP, T_cols)      hop-strided waveform, frame index on lanes
    # basis_ref: (2*D_PAD, N_FFT)   window-folded [cos; -sin] DFT basis
    # x_ref:     (D, T_TILE)        native (B, D, T)-layout block of x
    # out_ref:   (1, 1)             per-(batch, T-tile) partial |x - spec| sum
    t_tile = x_ref.shape[-1]
    j = pl.program_id(1)
    base = pl.multiple_of(j * t_tile, t_tile)

    # Rebuild the transposed frame matrix (N_FFT, t_tile) in VMEM:
    # frames_T[HOP*q + r, tau] = y[(base + tau + q) * HOP + r].
    slab = yT_ref[:, pl.ds(base, t_tile + HOP)]               # (HOP, t_tile+HOP)
    frames_t = jnp.concatenate(
        [slab[:, q:q + t_tile] for q in range(N_SHIFTS)], axis=0)  # (N_FFT, t_tile)

    # One fused MXU matmul; Hann window already folded into the basis rows.
    spec_c = jnp.dot(basis_ref[...], frames_t,
                     preferred_element_type=jnp.float32)      # (2*D_PAD, t_tile)
    real = spec_c[:D, :]
    imag = spec_c[D_PAD:D_PAD + D, :]
    spec = jnp.sqrt(real * real + imag * imag)                # (D, t_tile)
    # gth_phase = atan2(imag, real) is discarded by the loss -> not materialized.

    diff = jnp.abs(x_ref[...] - spec)
    if need_mask:  # static: only when T was padded up to a tile multiple
        col = base + jax.lax.broadcasted_iota(jnp.int32, (1, t_tile), 1)
        diff = jnp.where(col < true_t, diff, 0.0)
    out_ref[...] = jnp.sum(diff, keepdims=True)


def mae_loss(x, y, *, t_tile=512):
    """x: (B, D, T) float32 spectrogram, y: (B, L) float32 waveform."""
    b, d, t = x.shape
    assert d == D

    t_tile = min(t_tile, _round_up(t, 128))
    t_padded = _round_up(t, t_tile)
    num_tiles = t_padded // t_tile
    t_cols = t_padded + HOP

    # --- glue: hop-strided waveform layout (4x smaller than framed tensor) --
    l_needed = HOP * t_cols
    y_use = y[:, :min(y.shape[1], l_needed)].astype(jnp.float32)
    y_pad = jnp.pad(y_use, ((0, 0), (0, l_needed - y_use.shape[1])))
    y_t = jnp.transpose(y_pad.reshape(b, t_cols, HOP), (0, 2, 1))  # (B, HOP, t_cols)

    # --- fused, window-folded DFT basis (cos rows, then -sin rows, padded) ---
    n = jnp.arange(N_FFT, dtype=jnp.float32)
    window = 0.5 - 0.5 * jnp.cos(2.0 * jnp.pi * n / N_FFT)        # periodic Hann
    k = jnp.arange(D, dtype=jnp.float32)
    ang = 2.0 * jnp.pi * k[:, None] * n[None, :] / N_FFT          # (D, N_FFT)
    basis_w = jnp.zeros((2 * D_PAD, N_FFT), jnp.float32)
    basis_w = basis_w.at[:D].set(jnp.cos(ang) * window[None, :])
    basis_w = basis_w.at[D_PAD:D_PAD + D].set(-jnp.sin(ang) * window[None, :])

    x_pad = jnp.pad(x.astype(jnp.float32), ((0, 0), (0, 0), (0, t_padded - t)))

    kernel = functools.partial(_mae_stft_kernel, true_t=t,
                               need_mask=(t_padded != t))

    partials = pl.pallas_call(
        kernel,
        out_shape=jax.ShapeDtypeStruct((b, num_tiles, 1, 1), jnp.float32),
        grid_spec=pltpu.PrefetchScalarGridSpec(
            num_scalar_prefetch=0,
            grid=(b, num_tiles),
            in_specs=[
                # full per-batch waveform slab (only HOP samples per frame);
                # block index constant over j -> fetched once per batch
                pl.BlockSpec((pl.Squeezed(), HOP, t_cols),
                             lambda i, j: (i, 0, 0)),
                pl.BlockSpec((2 * D_PAD, N_FFT), lambda i, j: (0, 0)),
                pl.BlockSpec((pl.Squeezed(), D, t_tile),
                             lambda i, j: (i, 0, j)),
            ],
            out_specs=pl.BlockSpec(
                (pl.Squeezed(), pl.Squeezed(), 1, 1),
                lambda i, j: (i, j, 0, 0)),
        ),
        compiler_params=pltpu.CompilerParams(
            dimension_semantics=("parallel", "arbitrary"),
            vmem_limit_bytes=32 * 1024 * 1024),
    )(y_t, basis_w, x_pad)

    total = jnp.sum(partials)
    return (total / jnp.float32(b * d * t)) * jnp.float32(d)


def _mae_loss_reference(x, y):
    """Pure-JAX reference mirroring the PyTorch forward."""
    b, d, t = x.shape
    n = jnp.arange(N_FFT, dtype=jnp.float32)
    window = 0.5 - 0.5 * jnp.cos(2.0 * jnp.pi * n / N_FFT)
    idx = jnp.arange(t)[:, None] * HOP + jnp.arange(N_FFT)[None, :]
    frames = y[:, idx] * window[None, None, :]                 # (B, T, N_FFT)
    k = jnp.arange(D, dtype=jnp.float32)
    ang = 2.0 * jnp.pi * n[:, None] * k[None, :] / N_FFT
    real = jnp.einsum("btn,nk->btk", frames, jnp.cos(ang))
    imag = jnp.einsum("btn,nk->btk", frames, -jnp.sin(ang))
    spec = jnp.sqrt(real * real + imag * imag)                 # (B, T, D)
    gth_spec = jnp.transpose(spec, (0, 2, 1))                  # (B, D, T)
    return jnp.mean(jnp.abs(x - gth_spec)) * d


if __name__ == "__main__":
    key = jax.random.PRNGKey(0)
    kx, ky, kx2, ky2 = jax.random.split(key, 4)

    # Small primary case: B=2, D=17, T=8 (single masked T-tile).
    B, T = 2, 8
    L = N_FFT + (T - 1) * HOP                                  # 88 samples
    x = jax.random.normal(kx, (B, D, T), dtype=jnp.float32)    # (b, d, t)
    y = jax.random.normal(ky, (B, L), dtype=jnp.float32)       # waveform

    out = jax.block_until_ready(mae_loss(x, y))
    ref = jax.block_until_ready(_mae_loss_reference(x, y))
    assert jnp.allclose(out, ref, rtol=1e-3, atol=1e-3), (out, ref)

    # Second case exercising multiple T tiles + tail masking: T=200, t_tile=128.
    T2 = 200
    L2 = N_FFT + (T2 - 1) * HOP
    x2 = jax.random.normal(kx2, (B, D, T2), dtype=jnp.float32)
    y2 = jax.random.normal(ky2, (B, L2), dtype=jnp.float32)
    out2 = jax.block_until_ready(mae_loss(x2, y2, t_tile=128))
    ref2 = jax.block_until_ready(_mae_loss_reference(x2, y2))
    assert jnp.allclose(out2, ref2, rtol=1e-3, atol=1e-3), (out2, ref2)

    print("KERNEL_OK")
</pallas_src>

<mosaic_0001>
module attributes {stable_mosaic.version = 11 : i64} {
  func.func @_mae_stft_kernel(%arg0: i32, %arg1: i32, %arg2: memref<1x8x136xf32, #tpu.memory_space<vmem>>, %arg3: memref<48x32xf32, #tpu.memory_space<vmem>>, %arg4: memref<1x17x128xf32, #tpu.memory_space<vmem>>, %arg5: memref<1x1x1x1xf32, #tpu.memory_space<vmem>>) attributes {dimension_semantics = [#tpu.dimension_semantics<parallel>, #tpu.dimension_semantics<arbitrary>], iteration_bounds = array<i64: 2, 1>, scalar_prefetch = 0 : i64, scratch_operands = 0 : i64, tpu.core_type = #tpu.core_type<tc>, window_params = [{transform_indices = @transform_0, window_bounds = array<i64: 1, 8, 136>}, {pipeline_mode = #tpu.pipeline_mode<synchronous>, transform_indices = @transform_1, window_bounds = array<i64: 48, 32>}, {transform_indices = @transform_2, window_bounds = array<i64: 1, 17, 128>}, {transform_indices = @transform_3, window_bounds = array<i64: 1, 1, 1, 1>}]} {
    %c128_i32 = arith.constant 128 : i32
    %0 = arith.muli %arg1, %c128_i32 : i32
    %1 = tpu.assume_multiple %0, 128 : i32
    %c0 = arith.constant 0 : index
    %c0_0 = arith.constant 0 : index
    %2 = arith.index_cast %1 : i32 to index
    %3 = vector.load %arg2[%c0, %c0_0, %2] : memref<1x8x136xf32, #tpu.memory_space<vmem>>, vector<1x8x136xf32>
    %4 = vector.shape_cast %3 : vector<1x8x136xf32> to vector<8x136xf32>
    %5 = vector.extract_strided_slice %4 {offsets = [0, 0], sizes = [8, 128], strides = [1, 1]} : vector<8x136xf32> to vector<8x128xf32>
    %6 = vector.extract_strided_slice %4 {offsets = [0, 1], sizes = [8, 128], strides = [1, 1]} : vector<8x136xf32> to vector<8x128xf32>
    %7 = vector.extract_strided_slice %4 {offsets = [0, 2], sizes = [8, 128], strides = [1, 1]} : vector<8x136xf32> to vector<8x128xf32>
    %8 = vector.extract_strided_slice %4 {offsets = [0, 3], sizes = [8, 128], strides = [1, 1]} : vector<8x136xf32> to vector<8x128xf32>
    %9 = tpu.concatenate %5, %6, %7, %8 in 0 : vector<8x128xf32>, vector<8x128xf32>, vector<8x128xf32>, vector<8x128xf32> -> vector<32x128xf32>
    %c0_1 = arith.constant 0 : index
    %c0_2 = arith.constant 0 : index
    %10 = vector.load %arg3[%c0_1, %c0_2] : memref<48x32xf32, #tpu.memory_space<vmem>>, vector<48x32xf32>
    %cst = arith.constant dense<0.000000e+00> : vector<48x128xf32>
    %11 = tpu.matmul %10, %9, %cst {dimension_numbers = #tpu.dot_dimension_numbers<[1], [0], [0], [1], [0, 0, 1, 1], [], []>} : vector<48x32xf32>, vector<32x128xf32>, vector<48x128xf32> -> vector<48x128xf32>
    %12 = vector.extract_strided_slice %11 {offsets = [0, 0], sizes = [17, 128], strides = [1, 1]} : vector<48x128xf32> to vector<17x128xf32>
    %13 = vector.extract_strided_slice %11 {offsets = [24, 0], sizes = [17, 128], strides = [1, 1]} : vector<48x128xf32> to vector<17x128xf32>
    %14 = arith.mulf %12, %12 : vector<17x128xf32>
    %15 = arith.mulf %13, %13 : vector<17x128xf32>
    %16 = arith.addf %14, %15 : vector<17x128xf32>
    %17 = math.sqrt %16 : vector<17x128xf32>
    %c0_3 = arith.constant 0 : index
    %c0_4 = arith.constant 0 : index
    %c0_5 = arith.constant 0 : index
    %18 = vector.load %arg4[%c0_3, %c0_4, %c0_5] : memref<1x17x128xf32, #tpu.memory_space<vmem>>, vector<1x17x128xf32>
    %19 = vector.shape_cast %18 : vector<1x17x128xf32> to vector<17x128xf32>
    %20 = arith.subf %19, %17 : vector<17x128xf32>
    %21 = math.absf %20 : vector<17x128xf32>
    %22 = tpu.iota {dimensions = array<i32: 1>} : vector<1x128xi32>
    %23 = vector.broadcast %1 : i32 to vector<1x128xi32>
    %24 = arith.addi %23, %22 : vector<1x128xi32>
    %c8_i32 = arith.constant 8 : i32
    %25 = vector.broadcast %c8_i32 : i32 to vector<1x128xi32>
    %26 = arith.cmpi slt, %24, %25 : vector<1x128xi32>
    %cst_6 = arith.constant 0.000000e+00 : f32
    %27 = vector.shape_cast %26 : vector<1x128xi1> to vector<1x128xi1>
    %28 = vector.broadcast %27 : vector<1x128xi1> to vector<17x128xi1>
    %29 = vector.broadcast %cst_6 : f32 to vector<17x128xf32>
    %30 = arith.select %28, %21, %29 : vector<17x128xi1>, vector<17x128xf32>
    %31 = vector.shape_cast %30 : vector<17x128xf32> to vector<1x17x128xf32>
    %cst_7 = arith.constant dense<0.000000e+00> : vector<1xf32>
    %32 = vector.multi_reduction <add>, %31, %cst_7 [1, 2] : vector<1x17x128xf32> to vector<1xf32>
    %33 = vector.shape_cast %32 : vector<1xf32> to vector<1x1x1xf32>
    %34 = vector.extract %33[0, 0, 0] : f32 from vector<1x1x1xf32>
    %35 = vector.broadcast %34 : f32 to vector<1x1xf32>
    %c0_8 = arith.constant 0 : index
    %c0_9 = arith.constant 0 : index
    %c0_10 = arith.constant 0 : index
    %c0_11 = arith.constant 0 : index
    %36 = vector.load %arg5[%c0_8, %c0_9, %c0_10, %c0_11] : memref<1x1x1x1xf32, #tpu.memory_space<vmem>>, vector<1x1x1x1xf32>
    %37 = vector.shape_cast %36 : vector<1x1x1x1xf32> to vector<1x1xf32>
    %38 = vector.shape_cast %35 : vector<1x1xf32> to vector<1x1x1x1xf32>
    tpu.vector_store %arg5[%c0_8, %c0_9, %c0_10, %c0_11], %38 {strides = array<i32>} : memref<1x1x1x1xf32, #tpu.memory_space<vmem>>, vector<1x1x1x1xf32>,
    return
  }
  func.func @transform_0(%arg0: i32, %arg1: i32) -> (i32, i32, i32) {
    %c0_i32 = arith.constant 0 : i32
    %c0_i32_0 = arith.constant 0 : i32
    %c0_i32_1 = arith.constant 0 : i32
    return %arg0, %c0_i32, %c0_i32_0 : i32, i32, i32
  }
  func.func @transform_1(%arg0: i32, %arg1: i32) -> (i32, i32) {
    %c0_i32 = arith.constant 0 : i32
    %c0_i32_0 = arith.constant 0 : i32
    %c0_i32_1 = arith.constant 0 : i32
    return %c0_i32, %c0_i32_0 : i32, i32
  }
  func.func @transform_2(%arg0: i32, %arg1: i32) -> (i32, i32, i32) {
    %c0_i32 = arith.constant 0 : i32
    %c0_i32_0 = arith.constant 0 : i32
    return %arg0, %c0_i32, %arg1 : i32, i32, i32
  }
  func.func @transform_3(%arg0: i32, %arg1: i32) -> (i32, i32, i32, i32) {
    %c0_i32 = arith.constant 0 : i32
    %c0_i32_0 = arith.constant 0 : i32
    %c0_i32_1 = arith.constant 0 : i32
    return %arg0, %arg1, %c0_i32, %c0_i32_0 : i32, i32, i32, i32
  }
}

</mosaic_0001>

<llo_original>
// kernel: tpu_custom_call.1
$region0: #{tpu_custom_call.1}
  #allocation0 [shape = 'u32[]', space=smem, size = 0x4, offset = 0x4, fixed_abs, tag = 'smem constant byte address 0x4 - core index']
  #allocation1 [shape = 'u32[144,128]{1,0:T(1,128)}', space=vmem, size = 0x12000, scoped, tag = 'internal scratch']
  %s0 = inlined_call_operand.vmem [shape: f32[2,8,136], index: 0, kind: input, shape index: {}]
  %s1 = inlined_call_operand.vmem [shape: f32[48,32], index: 1, kind: input, shape index: {}]
  %s2 = inlined_call_operand.vmem [shape: f32[2,17,128], index: 2, kind: input, shape index: {}]
  %s3 = inlined_call_operand.vmem [shape: f32[2,1,1,1], index: 3, kind: output, shape index: {}]
  %s4 = sld [smem:[#allocation0]]
  $region45: #{tpu_custom_call.1} parent=0
    _
  %s6 = ssub.s32 1, %s4
  %s7 = scalar_select 0, %s6, %s4
  loop: start=0, step=1, limit=4
  $region2: #{tpu_custom_call.1} parent=0 // loop_pre_header
    _
  $region3: #{tpu_custom_call.1} parent=0 // loop_header
    %s9 = sphi 0, %s13
    %p10 = scmp.ge.s32.totalorder %s9, 4
    %s16 = sphi 0, %s28
    %s17 = sphi 0, %s24
    %s18 = sphi 0, %s16
    %s19 = sphi 0, %s17
    %s20 = sphi 0, %s18
    %s21 = sphi 0, %s19
    %s31 = sphi 0, %s33
    %s34 = sphi 0, %s31
    %s35 = sphi 0, %s34
    %s51 = sphi 0, %s35
    %s55 = sphi 0, %s55
    %s57 = sphi 0, %s55
    %s58 = sphi 0, %s57
    %s72 = sphi 0, %s58
    %s80 = sphi 0, %s82
    %s83 = sphi 0, %s80
    %s84 = sphi 0, %s83
    %s100 = sphi 0, %s84
    %s108 = sphi 0, %s110
    %s111 = sphi 0, %s108
    %s112 = sphi 0, %s111
    %s128 = sphi 0, %s112
  $region4: #{tpu_custom_call.1} parent=0 // loop_header_branch
    %12 = sbr.rel (%p10) target = $region8
  $region5: #{tpu_custom_call.1} parent=0 // loop_body
    %s14 = ssub.s32 %s9, 1
    %s15 = ssub.s32 %s9, 2
    %s22 = sadd.s32 1, %s17
    %p23 = scmp.ge.s32.totalorder %s22, 1
    %s24 = scalar_select %p23, 0, %s22
    %s25 = sadd.s32 1, %s16
    %s26 = scalar_select %p23, %s25, %s16
    %p27 = scmp.ge.s32.totalorder %s26, 2
    %s28 = scalar_select %p27, 0, %s26
    %s29 = ssub.s32 %s16, %s28
    %p30 = scmp.eq.s32.totalorder %s29, 0
    %s32 = sadd.s32 %s31, 1
    %s33 = scalar_select %p30, %s31, %s32
    %p36 = pneg %p30
    %p37 = scmp.eq.s32.totalorder %s9, 1
    %p38 = por %p36, %p37
    %p39 = scmp.ne.s32.totalorder %s31, %s34
    %p40 = scmp.eq.s32.totalorder %s9, 0
    %p41 = por %p39, %p40
    %p42 = scmp.ne.s32.totalorder %s31, %s34
    %p43 = scmp.eq.s32.totalorder %s14, 1
    %p44 = por %p42, %p43
    %p45 = scmp.ne.s32.totalorder %s34, %s35
    %p46 = scmp.eq.s32.totalorder %s14, 0
    %p47 = por %p45, %p46
    %p48 = scmp.ne.s32.totalorder %s34, %s35
    %p49 = scmp.eq.s32.totalorder %s15, 1
    %p50 = por %p48, %p49
    %p52 = scmp.ne.s32.totalorder %s35, %s51
    %p53 = scmp.eq.s32.totalorder %s15, 0
    %p54 = por %p52, %p53
    %s56 = sadd.s32 %s55, 1
    %p59 = scmp.eq.s32.totalorder %s9, 1
    %p60 = scmp.ne.s32.totalorder %s55, %s57
    %p61 = scmp.eq.s32.totalorder %s9, 0
    %p62 = por %p60, %p61
    %p63 = scmp.ne.s32.totalorder %s55, %s57
    %p64 = scmp.eq.s32.totalorder %s14, 1
    %p65 = por %p63, %p64
    %p66 = scmp.ne.s32.totalorder %s57, %s58
    %p67 = scmp.eq.s32.totalorder %s14, 0
    %p68 = por %p66, %p67
    %p69 = scmp.ne.s32.totalorder %s57, %s58
    %p70 = scmp.eq.s32.totalorder %s15, 1
    %p71 = por %p69, %p70
    %p73 = scmp.ne.s32.totalorder %s58, %s72
    %p74 = scmp.eq.s32.totalorder %s15, 0
    %p75 = por %p73, %p74
    %s76 = ssub.s32 %s16, %s28
    %s77 = ssub.s32 %s17, %s24
    %s78 = sor.u32 %s76, %s77
    %p79 = scmp.eq.s32.totalorder %s78, 0
    %s81 = sadd.s32 %s80, 1
    %s82 = scalar_select %p79, %s80, %s81
    %p85 = pneg %p79
    %p86 = scmp.eq.s32.totalorder %s9, 1
    %p87 = por %p85, %p86
    %p88 = scmp.ne.s32.totalorder %s80, %s83
    %p89 = scmp.eq.s32.totalorder %s9, 0
    %p90 = por %p88, %p89
    %p91 = scmp.ne.s32.totalorder %s80, %s83
    %p92 = scmp.eq.s32.totalorder %s14, 1
    %p93 = por %p91, %p92
    %p94 = scmp.ne.s32.totalorder %s83, %s84
    %p95 = scmp.eq.s32.totalorder %s14, 0
    %p96 = por %p94, %p95
    %p97 = scmp.ne.s32.totalorder %s83, %s84
    %p98 = scmp.eq.s32.totalorder %s15, 1
    %p99 = por %p97, %p98
    %p101 = scmp.ne.s32.totalorder %s84, %s100
    %p102 = scmp.eq.s32.totalorder %s15, 0
    %p103 = por %p101, %p102
    %s104 = ssub.s32 %s16, %s28
    %s105 = ssub.s32 %s17, %s24
    %s106 = sor.u32 %s104, %s105
    %p107 = scmp.eq.s32.totalorder %s106, 0
    %s109 = sadd.s32 %s108, 1
    %s110 = scalar_select %p107, %s108, %s109
    %p113 = pneg %p107
    %p114 = scmp.eq.s32.totalorder %s9, 1
    %p115 = por %p113, %p114
    %p116 = scmp.ne.s32.totalorder %s108, %s111
    %p117 = scmp.eq.s32.totalorder %s9, 0
    %p118 = por %p116, %p117
    %p119 = scmp.ne.s32.totalorder %s108, %s111
    %p120 = scmp.eq.s32.totalorder %s14, 1
    %p121 = por %p119, %p120
    %p122 = scmp.ne.s32.totalorder %s111, %s112
    %p123 = scmp.eq.s32.totalorder %s14, 0
    %p124 = por %p122, %p123
    %p125 = scmp.ne.s32.totalorder %s111, %s112
    %p126 = scmp.eq.s32.totalorder %s15, 1
    %p127 = por %p125, %p126
    %p129 = scmp.ne.s32.totalorder %s112, %s128
    %p130 = scmp.eq.s32.totalorder %s15, 0
    %p131 = por %p129, %p130
    %p132 = scmp.le.s32.totalorder 1, %s9
    %p133 = scmp.lt.s32.totalorder %s9, 3
    %p134 = pnand %p132, %p133
    %p135 = pneg %p134
    // Predicated region
    $region9: #{tpu_custom_call.1} parent=5 // pred_check
      _
    $region10: #{tpu_custom_call.1} parent=5 // pred_check_branch
      %137 = sbr.rel (%p134) target = $region12
    $region11: #{tpu_custom_call.1} parent=5 // pred_region
      %s138 = ssub.s32 %s9, 1
      // Predicated region
      $region13: #{tpu_custom_call.1} parent=11 // pred_check
        %p139 = pneg %p68
      $region14: #{tpu_custom_call.1} parent=11 // pred_check_branch
        %141 = sbr.rel (%p139) target = $region16
      $region15: #{tpu_custom_call.1} parent=11 // pred_region
        _
      $region16: #{tpu_custom_call.1} parent=11 // pred_fallthru
        _
    $region12: #{tpu_custom_call.1} parent=5 // pred_fallthru
      _
    %p142 = scmp.lt.s32.totalorder %s9, 2
    // Predicated region
    $region17: #{tpu_custom_call.1} parent=5 // pred_check
      %p143 = pneg %p142
    $region18: #{tpu_custom_call.1} parent=5 // pred_check_branch
      %145 = sbr.rel (%p143) target = $region20
    $region19: #{tpu_custom_call.1} parent=5 // pred_region
      // Predicated region
      $region21: #{tpu_custom_call.1} parent=19 // pred_check
        %p146 = pneg %p41
      $region22: #{tpu_custom_call.1} parent=19 // pred_check_branch
        %148 = sbr.rel (%p146) target = $region24
      $region23: #{tpu_custom_call.1} parent=19 // pred_region
        %p149 = scmp.lt.s32.totalorder %s16, 1
        %s150 = scalar_select %p149, %s16, 1
        %s151 = smul.addr %s150, 2
        %s152 = smul.addr %s151, 8
        %s153 = scalar_lea.vmem %s0, %s152
      $region24: #{tpu_custom_call.1} parent=19 // pred_fallthru
        _
      // Predicated region
      $region25: #{tpu_custom_call.1} parent=19 // pred_check
        %p154 = pneg %p90
      $region26: #{tpu_custom_call.1} parent=19 // pred_check_branch
        %156 = sbr.rel (%p154) target = $region28
      $region27: #{tpu_custom_call.1} parent=19 // pred_region
        %p157 = scmp.lt.s32.totalorder %s16, 1
        %s158 = scalar_select %p157, %s16, 1
        %p159 = scmp.lt.s32.totalorder %s17, 0
        %s160 = scalar_select %p159, %s17, 0
        %s161 = smul.addr %s158, 3
        %s162 = sadd.s32 %s160, %s161
        %s163 = smul.addr %s162, 8
        %s164 = scalar_lea.vmem %s2, %s163
      $region28: #{tpu_custom_call.1} parent=19 // pred_fallthru
        _
    $region20: #{tpu_custom_call.1} parent=5 // pred_fallthru
      _
    %p165 = scmp.le.s32.totalorder 1, %s9
    %p166 = scmp.lt.s32.totalorder %s9, 3
    %p167 = pnand %p165, %p166
    %p168 = pneg %p167
    // Predicated region
    $region29: #{tpu_custom_call.1} parent=5 // pred_check
      _
    $region30: #{tpu_custom_call.1} parent=5 // pred_check_branch
      %170 = sbr.rel (%p167) target = $region32
    $region31: #{tpu_custom_call.1} parent=5 // pred_region
      %s171 = ssub.s32 %s9, 1
      %p172 = scmp.lt.s32.totalorder %s18, 1
      %s173 = scalar_select %p172, %s18, 1
      %s174 = smul.addr %s173, 2
      %s175 = smul.addr %s174, 8
      %s176 = scalar_lea.vmem %s0, %s175
      %p177 = pneg %p47
      %p178 = pneg %p44
      %p179 = pneg %p68
      %p180 = pneg %p65
      %p181 = scmp.lt.s32.totalorder %s18, 1
      %s182 = scalar_select %p181, %s18, 1
      %p183 = scmp.lt.s32.totalorder %s19, 0
      %s184 = scalar_select %p183, %s19, 0
      %s185 = smul.addr %s182, 3
      %s186 = sadd.s32 %s184, %s185
      %s187 = smul.addr %s186, 8
      %s188 = scalar_lea.vmem %s2, %s187
      %p189 = pneg %p96
      %p190 = pneg %p93
      %p191 = pneg %p124
      %p192 = pneg %p121
      %p193 = scmp.lt.s32.totalorder %s18, 1
      %s194 = scalar_select %p193, %s18, 1
      %p195 = scmp.lt.s32.totalorder %s19, 0
      %s196 = scalar_select %p195, %s19, 0
      %s197 = sadd.s32 %s196, %s194
      %s198 = scalar_lea.vmem %s3, %s197
      %p199 = scmp.lt.s32.totalorder %s18, 1
      %s200 = scalar_select %p199, %s18, 1
      %s201 = smul.addr %s200, 2
      %s202 = smul.addr %s201, 8
      %s203 = scalar_lea.vmem %s0, %s202
      %p204 = scmp.lt.s32.totalorder %s18, 1
      %s205 = scalar_select %p204, %s18, 1
      %p206 = scmp.lt.s32.totalorder %s19, 0
      %s207 = scalar_select %p206, %s19, 0
      %s208 = smul.addr %s205, 3
      %s209 = sadd.s32 %s207, %s208
      %s210 = smul.addr %s209, 8
      %s211 = scalar_lea.vmem %s2, %s210
      %p212 = scmp.lt.s32.totalorder %s18, 1
      %s213 = scalar_select %p212, %s18, 1
      %p214 = scmp.lt.s32.totalorder %s19, 0
      %s215 = scalar_select %p214, %s19, 0
      %s216 = sadd.s32 %s215, %s213
      %s217 = scalar_lea.vmem %s3, %s216
      %s218 = smul.u32 %s19, 128
      %s219 = sshra.s32 %s218, 7
      %s220 = sand.u32 %s218, 127
      %s221 = smul.addr %s219, 8
      %s222 = scalar_lea.vmem %s203, %s221
      %v223 = vld [vmem:[%s222] sm:$0xff]
      %v224 = vld [vmem:[%s222 + $0x8] sm:$0xff]
      %227 = vrot.lane.b32.xlu0 %v223, 127
      %v228 = vpop.permute.xlu0 %227
      %229 = vrot.lane.b32.xlu0 %v224, 127
      %v230 = vpop.permute.xlu0 %229
      %vm231 = vcmask 1039360
      %v232 = vsel %vm231, %v228, %v230
      %234 = vrot.lane.b32.xlu0 %v223, 126
      %v235 = vpop.permute.xlu0 %234
      %236 = vrot.lane.b32.xlu0 %v224, 126
      %v237 = vpop.permute.xlu0 %236
      %vm238 = vcmask 1031168
      %v239 = vsel %vm238, %v235, %v237
      %241 = vrot.lane.b32.xlu0 %v223, 125
      %v242 = vpop.permute.xlu0 %241
      %243 = vrot.lane.b32.xlu0 %v224, 125
      %v244 = vpop.permute.xlu0 %243
      %vm245 = vcmask 1022976
      %v246 = vsel %vm245, %v242, %v244
      %v248 = vld [vmem:[%s1] sm:$0xff]
      %v249 = vld [vmem:[%s1 + $0x8] sm:$0xff]
      %v250 = vld [vmem:[%s1 + $0x10] sm:$0xff]
      %v251 = vld [vmem:[%s1 + $0x18] sm:$0xff]
      %v252 = vld [vmem:[%s1 + $0x20] sm:$0xff]
      %v253 = vld [vmem:[%s1 + $0x28] sm:$0xff]
      %vm254 = vcmask 261120
      %v256 = vsel %vm254, %v248, 0
      %v259 = vsel %vm254, %v249, 0
      %v262 = vsel %vm254, %v250, 0
      %v265 = vsel %vm254, %v251, 0
      %v268 = vsel %vm254, %v252, 0
      %v271 = vsel %vm254, %v253, 0
      %273 = vmatprep.subr.mxu0 0.0
      %274 = vmatpush1.msra.mxu0 %v223
      %275 = vmatprep.subr.mxu0 0.0
      %276 = vmatpush1.msra.mxu0 %v232
      %277 = vmatprep.subr.mxu0 0.0
      %278 = vmatpush1.msra.mxu0 %v239
      %279 = vmatprep.subr.mxu0 0.0
      %280 = vmatpush1.msra.mxu0 %v246
      %281 = vmatprep.subr.mxu0 0.0
      %282 = vmatpush1.msra.mxu0 0.0
      %283 = vmatprep.subr.mxu0 0.0
      %284 = vmatpush1.msra.mxu0 0.0
      %285 = vmatprep.subr.mxu0 0.0
      %286 = vmatpush1.msra.mxu0 0.0
      %287 = vmatprep.subr.mxu0 0.0
      %288 = vmatpush1.msra.mxu0 0.0
      %289 = vmatprep.subr.mxu0 0.0
      %290 = vmatpush1.msra.mxu0 0.0
      %291 = vmatprep.subr.mxu0 0.0
      %292 = vmatpush1.msra.mxu0 0.0
      %293 = vmatprep.subr.mxu0 0.0
      %294 = vmatpush1.msra.mxu0 0.0
      %295 = vmatprep.subr.mxu0 0.0
      %296 = vmatpush1.msra.mxu0 0.0
      %297 = vmatprep.subr.mxu0 0.0
      %298 = vmatpush1.msra.mxu0 0.0
      %299 = vmatprep.subr.mxu0 0.0
      %300 = vmatpush1.msra.mxu0 0.0
      %301 = vmatprep.subr.mxu0 0.0
      %302 = vmatpush1.msra.mxu0 0.0
      %303 = vmatprep.subr.mxu0 0.0
      %304 = vmatpush1.msra.mxu0 0.0
      %305 = vmatprep.subr.mxu0 0.0
      %306 = vmatpush1.msra.mxu0 0.0
      %307 = vmatprep.subr.mxu0 0.0
      %308 = vmatpush1.msra.mxu0 0.0
      %309 = vmatprep.subr.mxu0 0.0
      %310 = vmatpush1.msra.mxu0 0.0
      %311 = vmatprep.subr.mxu0 0.0
      %312 = vmatpush1.msra.mxu0 0.0
      %313 = vmatprep.subr.mxu0 0.0
      %314 = vmatpush1.msra.mxu0 0.0
      %315 = vmatprep.subr.mxu0 0.0
      %316 = vmatpush1.msra.mxu0 0.0
      %317 = vmatprep.subr.mxu0 0.0
      %318 = vmatpush1.msra.mxu0 0.0
      %319 = vmatprep.subr.mxu0 0.0
      %320 = vmatpush1.msra.mxu0 0.0
      %321 = vmatprep.subr.mxu0 0.0
      %322 = vmatpush1.msra.mxu0 0.0
      %323 = vmatprep.subr.mxu0 0.0
      %324 = vmatpush1.msra.mxu0 0.0
      %325 = vmatprep.subr.mxu0 0.0
      %326 = vmatpush1.msra.mxu0 0.0
      %327 = vmatprep.subr.mxu0 0.0
      %328 = vmatpush1.msra.mxu0 0.0
      %329 = vmatprep.subr.mxu0 0.0
      %330 = vmatpush1.msra.mxu0 0.0
      %331 = vmatprep.subr.mxu0 0.0
      %332 = vmatpush1.msra.mxu0 0.0
      %333 = vmatprep.subr.mxu0 0.0
      %334 = vmatpush1.msra.mxu0 0.0
      %335 = vmatprep.subr.mxu0 0.0
      %336 = vmatpush1.msra.mxu0 0.0
      %337 = vmatprep.mubr.f32.mxu0 0.0
      %338 = vmatmul.mubr.f32.gmra.mrb[0].mxu0 %v256
      %v339 = vpop.f32.mrb[0].mxu0
      %v340 = vadd.f32 0.0, %v339
      %v341 = vpop.f32.mrb[0].mxu0
      %342 = vmatprep.mubr.f32.mxu0 0.0
      %343 = vmatmul.mubr.f32.gmra.mrb[0].mxu0 %v259
      %v344 = vpop.f32.mrb[0].mxu0
      %v345 = vadd.f32 0.0, %v344
      %v346 = vpop.f32.mrb[0].mxu0
      %347 = vmatprep.mubr.f32.mxu0 0.0
      %348 = vmatmul.mubr.f32.gmra.mrb[0].mxu0 %v262
      %v349 = vpop.f32.mrb[0].mxu0
      %v350 = vadd.f32 0.0, %v349
      %v351 = vpop.f32.mrb[0].mxu0
      %352 = vmatprep.mubr.f32.mxu0 0.0
      %353 = vmatmul.mubr.f32.gmra.mrb[0].mxu0 %v265
      %v354 = vpop.f32.mrb[0].mxu0
      %v355 = vadd.f32 0.0, %v354
      %v356 = vpop.f32.mrb[0].mxu0
      %357 = vmatprep.mubr.f32.mxu0 0.0
      %358 = vmatmul.mubr.f32.gmra.mrb[0].mxu0 %v268
      %v359 = vpop.f32.mrb[0].mxu0
      %v360 = vadd.f32 0.0, %v359
      %v361 = vpop.f32.mrb[0].mxu0
      %362 = vmatprep.mubr.f32.mxu0 0.0
      %363 = vmatmul.mubr.f32.gmra.mrb[0].mxu0 %v271
      %v364 = vpop.f32.mrb[0].mxu0
      %v365 = vadd.f32 0.0, %v364
      %v366 = vpop.f32.mrb[0].mxu0
      %367 = vdwg.mxu0
      %v368 = vmul.f32 %v340, %v340
      %v369 = vmul.f32 %v345, %v345
      %v370 = vmul.f32 %v350, %v350
      %v371 = vmul.f32 %v355, %v355
      %v372 = vmul.f32 %v360, %v360
      %v373 = vmul.f32 %v365, %v365
      %v374 = vadd.f32 %v368, %v371
      %v375 = vadd.f32 %v369, %v372
      %v376 = vadd.f32 %v370, %v373
      %v377 = vrsqrt.pop %v374
      %v378 = vmul.f32 %v374, %v377
      %vm379 = vcmp.eq.f32.partialorder %v374, inf
      %v380 = vsel %vm379, %v374, %v378
      %vm381 = vcmp.eq.f32.partialorder %v374, 0.0
      %v382 = vand.u32 %v374, 2147483648
      %v383 = vsel %vm381, %v382, %v380
      %v384 = vrsqrt.pop %v375
      %v385 = vmul.f32 %v375, %v384
      %vm386 = vcmp.eq.f32.partialorder %v375, inf
      %v387 = vsel %vm386, %v375, %v385
      %vm388 = vcmp.eq.f32.partialorder %v375, 0.0
      %v389 = vand.u32 %v375, 2147483648
      %v390 = vsel %vm388, %v389, %v387
      %v391 = vrsqrt.pop %v376
      %v392 = vmul.f32 %v376, %v391
      %vm393 = vcmp.eq.f32.partialorder %v376, inf
      %v394 = vsel %vm393, %v376, %v392
      %vm395 = vcmp.eq.f32.partialorder %v376, 0.0
      %v396 = vand.u32 %v376, 2147483648
      %v397 = vsel %vm395, %v396, %v394
      %v398 = vld [vmem:[%s211] sm:$0xff]
      %v399 = vld [vmem:[%s211 + $0x8] sm:$0xff]
      %v400 = vld [vmem:[%s211 + $0x10] sm:$0x1]
      %v401 = vsub.f32 %v398, %v383
      %v402 = vsub.f32 %v399, %v390
      %v403 = vsub.f32 %v400, %v397
      %v404 = vand.u32 2147483647, %v401
      %v405 = vand.u32 2147483647, %v402
      %v406 = vand.u32 2147483647, %v403
      %v407 = vlaneseq
      %v408 = vand.u32 %v407, 127
      %v409 = vstv %s218
      %v410 = vadd.s32 %v409, %v408
      %vm411 = vcmp.lt.s32.totalorder %v410, 8
      %v412 = vsel %vm411, 1, 0
      %vm413 = vcmp.eq.s32.totalorder %v412, 1
      %v414 = vsel %vm413, %v404, 0.0
      %v415 = vsel %vm413, %v405, 0.0
      %v416 = vsel %vm413, %v406, 0.0
      %v417 = vadd.f32 %v414, %v415
      %vm418 = vcmask 1040384
      %v419 = vsel %vm418, %v416, 0.0
      %v420 = vadd.f32 %v417, %v419
      %421 = vadd.xlane.f32.xlu0 %v420
      %v422 = vpop.xlane.xlu0 %421
      %v423 = vrot.slane %v422, 4
      %v424 = vadd.f32 %v422, %v423
      %v425 = vrot.slane %v424, 2
      %v426 = vadd.f32 %v424, %v425
      %v427 = vrot.slane %v426, 1
      %v428 = vadd.f32 %v426, %v427
      %s429 = vtos %v428
      %v430 = vstv %s429
      %vm431 = vcmask 0
      %432 = vst.msk [vmem:[%s217] sm:$0x1] %vm431, %v430
      %p433 = scmp.lt.s32.totalorder %s18, 1
      %s434 = scalar_select %p433, %s18, 1
      %p435 = scmp.lt.s32.totalorder %s19, 0
      %s436 = scalar_select %p435, %s19, 0
      %s437 = sadd.s32 %s436, %s434
      %s438 = scalar_lea.vmem %s3, %s437
      // Predicated region
      $region33: #{tpu_custom_call.1} parent=31 // pred_check
        %p439 = pneg %p121
      $region34: #{tpu_custom_call.1} parent=31 // pred_check_branch
        %441 = sbr.rel (%p439) target = $region36
      $region35: #{tpu_custom_call.1} parent=31 // pred_region
        _
      $region36: #{tpu_custom_call.1} parent=31 // pred_fallthru
        _
    $region32: #{tpu_custom_call.1} parent=5 // pred_fallthru
      _
    %p442 = scmp.le.s32.totalorder 2, %s9
    // Predicated region
    $region37: #{tpu_custom_call.1} parent=5 // pred_check
      %p443 = pneg %p442
    $region38: #{tpu_custom_call.1} parent=5 // pred_check_branch
      %445 = sbr.rel (%p443) target = $region40
    $region39: #{tpu_custom_call.1} parent=5 // pred_region
      %s446 = ssub.s32 %s9, 2
      // Predicated region
      $region41: #{tpu_custom_call.1} parent=39 // pred_check
        %p447 = pneg %p127
      $region42: #{tpu_custom_call.1} parent=39 // pred_check_branch
        %449 = sbr.rel (%p447) target = $region44
      $region43: #{tpu_custom_call.1} parent=39 // pred_region
        %p450 = scmp.lt.s32.totalorder %s20, 1
        %s451 = scalar_select %p450, %s20, 1
        %p452 = scmp.lt.s32.totalorder %s21, 0
        %s453 = scalar_select %p452, %s21, 0
        %s454 = sadd.s32 %s453, %s451
        %s455 = scalar_lea.vmem %s3, %s454
      $region44: #{tpu_custom_call.1} parent=39 // pred_fallthru
        _
    $region40: #{tpu_custom_call.1} parent=5 // pred_fallthru
      _
  $region6: #{tpu_custom_call.1} parent=0 // loop_footer
    %s13 = sadd.s32 1, %s9
  $region7: #{tpu_custom_call.1} parent=0 // loop_footer_branch
    %8 = sbr.rel target = $region3
  $region8: #{tpu_custom_call.1} parent=0 // loop_exit
    _

</llo_original>
